<compile_context>
chip_gen: v7x
topology: tpu7x:2x2x1
jax: 0.10.0
libtpu: 0.0.40
codegen_flags: <defaults>
</compile_context>

<pallas_src>
import numpy as np
import jax
import jax.numpy as jnp
from jax import lax
from jax.experimental import pallas as pl
from jax.experimental.pallas import tpu as pltpu

# ----------------------------- configuration (small shapes) ------------------
B = 2                      # batch
N_QUERIES = 8              # number of queries
QUERY_DIM = 32             # query_dim (also feature-map channel count C)
NUM_LEARNABLE_POINTS = 4
LEARNABLE_POINTS_RANGE = 3.0
SEQ_LEN = 2                # sequence_length (T)
TEMPORAL_WEIGHT_DECAY = 0.5
N_CAMS = 2                 # camera_nb
FPN_LEVELS = 2             # fpn_levels
RESIDUAL_MODE = "cat"

NUM_UNIT_POINTS = 9                                  # 8 bbox corners + origin
KPT_NUM = NUM_UNIT_POINTS + NUM_LEARNABLE_POINTS     # P = 13
WEIGHT_CHANNEL = KPT_NUM * N_CAMS * FPN_LEVELS       # 52
LP_DIM = 3 * NUM_LEARNABLE_POINTS                    # 12
NP_PTS = N_QUERIES * KPT_NUM                         # 104 flattened (query, kpt)

FPN_SHAPES = [(16, 16), (8, 8)]                      # (H, W) per FPN level
IMG_W, IMG_H = 16.0, 16.0                            # pixel-normalization size

EGO_TIMESTAMP_IDX = 0
EGO_DIM = 5
TRAJ_DIM = 11
CAM_DIM = 7


# ----------------------------- parameters ------------------------------------
def generate_bbox_corners_points():
    """[3, 9] unit bbox corners (+/-0.5) plus origin."""
    cs = jnp.array([-0.5, 0.5], jnp.float32)
    xs, ys, zs = jnp.meshgrid(cs, cs, cs, indexing="ij")
    corners = jnp.stack([xs.ravel(), ys.ravel(), zs.ravel()], axis=0)  # [3, 8]
    origin = jnp.zeros((3, 1), jnp.float32)
    return jnp.concatenate([corners, origin], axis=1)                  # [3, 9]


def init_params(key):
    k1, k2, k3, k4 = jax.random.split(key, 4)

    def xavier(k, fan_in, fan_out):
        std = (2.0 / (fan_in + fan_out)) ** 0.5
        return (std * jax.random.normal(k, (fan_in, fan_out))).astype(jnp.float32)

    return {
        "w_lp": xavier(k1, QUERY_DIM, LP_DIM),
        "b_lp": (0.01 * jax.random.normal(k2, (1, LP_DIM))).astype(jnp.float32),
        "w_fw": xavier(k3, QUERY_DIM, WEIGHT_CHANNEL),
        "b_fw": (0.01 * jax.random.normal(k4, (1, WEIGHT_CHANNEL))).astype(jnp.float32),
    }


# ----------------------------- Pallas kernel 1: linear heads ------------------
def _heads_kernel(q_ref, wlp_ref, blp_ref, wfw_ref, bfw_ref, lp_ref, fw_ref):
    # q: (BN, D)  wlp: (D, 12)  wfw: (D, 52)  ->  lp: (BN, 12)  fw: (BN, 52)
    q = q_ref[...]
    zlp = jnp.dot(q, wlp_ref[...], preferred_element_type=jnp.float32) + blp_ref[...]
    lp_ref[...] = jnp.tanh(zlp) * LEARNABLE_POINTS_RANGE
    zfw = jnp.dot(q, wfw_ref[...], preferred_element_type=jnp.float32) + bfw_ref[...]
    fw_ref[...] = jax.nn.sigmoid(zfw)


def _run_heads_pallas(q2d, params):
    bn = q2d.shape[0]
    lp, fw = pl.pallas_call(
        _heads_kernel,
        out_shape=(jax.ShapeDtypeStruct((bn, LP_DIM), jnp.float32),
                   jax.ShapeDtypeStruct((bn, WEIGHT_CHANNEL), jnp.float32)),
    )(q2d, params["w_lp"], params["b_lp"], params["w_fw"], params["b_fw"])
    return lp, fw


def _run_heads_jnp(q2d, params):
    lp = jnp.tanh(q2d @ params["w_lp"] + params["b_lp"]) * LEARNABLE_POINTS_RANGE
    fw = jax.nn.sigmoid(q2d @ params["w_fw"] + params["b_fw"])
    return lp, fw


# --------------- Pallas kernel 2: fused sample + weight + aggregate -----------
def _fused_agg_kernel(*refs):
    # inputs : pix_u (1,T*Nc,1,NP)  pix_v (1,T*Nc,1,NP)  w (1,T*Nc*L,1,NP)
    #          cq (1,N,C)  inv_ws (1,N,1)  feats[cam*L+l] (T,C,H*W)
    # output : out (1, N, 2C)  = [content_query | weighted feature mean]
    n_feat = N_CAMS * FPN_LEVELS
    pix_u_ref, pix_v_ref, w_ref, cq_ref, inv_ws_ref = refs[:5]
    feat_refs = refs[5:5 + n_feat]
    out_ref = refs[5 + n_feat]

    c = cq_ref.shape[-1]
    acc = jnp.zeros((c, NP_PTS), jnp.float32)          # numerator, flattened (n,p)

    for t in range(SEQ_LEN):
        for cam in range(N_CAMS):
            tc = t * N_CAMS + cam
            u = pix_u_ref[0, tc]                       # (1, NP) normalized [0,1]
            v = pix_v_ref[0, tc]                       # (1, NP)
            for lvl in range(FPN_LEVELS):
                ht, wd = FPN_SHAPES[lvl]
                hw = ht * wd
                w_row = w_ref[0, tc * FPN_LEVELS + lvl]        # (1, NP) masked weight
                # grid_sample(align_corners=True) with grid = pixels*2-1:
                x = u * (wd - 1.0)
                y = v * (ht - 1.0)
                x0 = jnp.floor(x); y0 = jnp.floor(y)
                x1 = x0 + 1.0;     y1 = y0 + 1.0
                wx1 = x - x0; wx0 = 1.0 - wx1
                wy1 = y - y0; wy0 = 1.0 - wy1
                row_iota = lax.broadcasted_iota(jnp.int32, (hw, NP_PTS), 0)
                feat_t = feat_refs[cam * FPN_LEVELS + lvl][t]   # (C, HW)

                def tap_matmul(a, xi, yi, wt):
                    # one bilinear tap as a one-hot MXU matmul (padding_mode='zeros')
                    valid = ((xi >= 0.0) & (xi <= wd - 1.0)
                             & (yi >= 0.0) & (yi <= ht - 1.0))
                    xi_c = jnp.clip(xi, 0.0, wd - 1.0).astype(jnp.int32)
                    yi_c = jnp.clip(yi, 0.0, ht - 1.0).astype(jnp.int32)
                    idx = yi_c * wd + xi_c                               # (1, NP)
                    onehot = (row_iota == idx).astype(jnp.float32)       # (HW, NP)
                    m = onehot * (wt * w_row * valid.astype(jnp.float32))
                    return a + jnp.dot(feat_t, m,
                                       preferred_element_type=jnp.float32)

                # per-tap accumulation bounds vreg live ranges to one (HW,NP) tile
                acc = tap_matmul(acc, x0, y0, wx0 * wy0)
                acc = tap_matmul(acc, x1, y0, wx1 * wy0)
                acc = tap_matmul(acc, x0, y1, wx0 * wy1)
                acc = tap_matmul(acc, x1, y1, wx1 * wy1)

    # fold the keypoint axis ((n,p) -> n) on the MXU and emit (N, C) directly
    k_iota = lax.broadcasted_iota(jnp.int32, (N_QUERIES, NP_PTS), 1)
    n_iota = lax.broadcasted_iota(jnp.int32, (N_QUERIES, NP_PTS), 0)
    s_nt = ((k_iota >= n_iota * KPT_NUM)
            & (k_iota < (n_iota + 1) * KPT_NUM)).astype(jnp.float32)     # (N, NP)
    num_nc = lax.dot_general(s_nt, acc, (((1,), (1,)), ((), ())),
                             preferred_element_type=jnp.float32)         # (N, C)
    agg = num_nc * inv_ws_ref[0]                                          # (N, C)
    out_ref[0] = jnp.concatenate([cq_ref[0], agg], axis=-1)               # (N, 2C)


def _run_fused_agg_pallas(pix_u, pix_v, w_k, cq, inv_ws, feats):
    b, n, c = cq.shape
    tnc = SEQ_LEN * N_CAMS
    tncl = tnc * FPN_LEVELS
    in_specs = [
        pl.BlockSpec((1, tnc, 1, NP_PTS), lambda i: (i, 0, 0, 0)),
        pl.BlockSpec((1, tnc, 1, NP_PTS), lambda i: (i, 0, 0, 0)),
        pl.BlockSpec((1, tncl, 1, NP_PTS), lambda i: (i, 0, 0, 0)),
        pl.BlockSpec((1, n, c), lambda i: (i, 0, 0)),
        pl.BlockSpec((1, n, 1), lambda i: (i, 0, 0)),
    ]
    for f in feats:
        hw = f.shape[-1]
        in_specs.append(pl.BlockSpec((SEQ_LEN, c, hw), lambda i: (i, 0, 0)))
    return pl.pallas_call(
        _fused_agg_kernel,
        out_shape=jax.ShapeDtypeStruct((b, n, 2 * c), jnp.float32),
        grid=(b,),
        in_specs=in_specs,
        out_specs=pl.BlockSpec((1, n, 2 * c), lambda i: (i, 0, 0)),
        compiler_params=pltpu.CompilerParams(dimension_semantics=("parallel",)),
    )(pix_u, pix_v, w_k, cq, inv_ws, *feats)


# ----------------------------- JAX reference glue ------------------------------
def _grid_sample_bilinear(feat, grid):
    """feat: [BT, C, H, W] NCHW, grid: [BT, Q, 2] in [-1, 1] (x, y);
    bilinear, align_corners=True, padding_mode='zeros' (matches the module)."""
    bt, c, h, w = feat.shape
    x = (grid[..., 0] + 1.0) * 0.5 * (w - 1)
    y = (grid[..., 1] + 1.0) * 0.5 * (h - 1)
    x0 = jnp.floor(x); y0 = jnp.floor(y)
    x1 = x0 + 1.0;     y1 = y0 + 1.0
    wx1 = x - x0; wx0 = 1.0 - wx1
    wy1 = y - y0; wy0 = 1.0 - wy1
    flat = feat.reshape(bt, c, h * w)

    def tap(xi, yi, wgt):
        valid = (xi >= 0) & (xi <= w - 1) & (yi >= 0) & (yi <= h - 1)
        xi_c = jnp.clip(xi, 0, w - 1).astype(jnp.int32)
        yi_c = jnp.clip(yi, 0, h - 1).astype(jnp.int32)
        idx = yi_c * w + xi_c
        g = jnp.take_along_axis(flat, idx[:, None, :], axis=2)
        return g * (wgt * valid.astype(feat.dtype))[:, None, :]

    return (tap(x0, y0, wx0 * wy0) + tap(x1, y0, wx1 * wy0)
            + tap(x0, y1, wx0 * wy1) + tap(x1, y1, wx1 * wy1))      # [BT, C, Q]


def _project_points_simplified(trajs, calibrations, ego_states, kpts_all):
    # TODO(synk): project_points_to_image is an external dependency of the original
    # module; approximated here by translation (object center, ego, camera) + pinhole
    # projection, normalized to [0, 1]; behind-camera points map to -1 (=> invalid).
    b, n, _, p = kpts_all.shape
    center = trajs[:, :, 0:3]                                       # [B, N, 3]
    pts = center[:, :, :, None] + kpts_all                          # [B, N, 3, P]
    ego_t = ego_states[:, :, 1:4]                                   # [B, T, 3]
    pts_t = pts[:, None] - ego_t[:, :, None, :, None]               # [B, T, N, 3, P]
    cam_t = calibrations[:, :, 4:7]                                 # [B, Nc, 3]
    pts_c = pts_t[:, :, :, None] - cam_t[:, None, None, :, :, None] # [B, T, N, Nc, 3, P]
    x = pts_c[:, :, :, :, 0, :]
    y = pts_c[:, :, :, :, 1, :]
    z = pts_c[:, :, :, :, 2, :]
    fx = calibrations[:, None, None, :, 0, None]
    fy = calibrations[:, None, None, :, 1, None]
    cx = calibrations[:, None, None, :, 2, None]
    cy = calibrations[:, None, None, :, 3, None]
    z_safe = jnp.maximum(z, 1e-3)
    u = (fx * x / z_safe + cx) / IMG_W
    v = (fy * y / z_safe + cy) / IMG_H
    behind = z < 1e-3
    u = jnp.where(behind, -1.0, u)
    v = jnp.where(behind, -1.0, v)
    pixels = jnp.stack([u, v], axis=-1)                             # [B, T, N, Nc, P, 2]
    t = ego_states.shape[1]
    nc = calibrations.shape[1]
    return pixels.reshape(b * t, n, nc, p, 2)


# ----------------------------- forward ----------------------------------------
def forward(params, unit_points, trajs, camera_ids, content_queries, features_dict,
            calibrations, ego_states, pos_queries=None, use_pallas=True):
    b, n, _ = trajs.shape
    t, nc, p, lv, c = SEQ_LEN, N_CAMS, KPT_NUM, FPN_LEVELS, QUERY_DIM

    queries = content_queries if pos_queries is None else content_queries + pos_queries
    q2d = queries.reshape(b * n, c)

    if use_pallas:
        lp_flat, fw_flat = _run_heads_pallas(q2d, params)
    else:
        lp_flat, fw_flat = _run_heads_jnp(q2d, params)

    learnable_points = lp_flat.reshape(b, n, 3, NUM_LEARNABLE_POINTS)
    unit = jnp.broadcast_to(unit_points[None, None], (b, n, 3, NUM_UNIT_POINTS))
    kpts_all = jnp.concatenate([unit, learnable_points], axis=3)     # [B, N, 3, P]

    pixels = _project_points_simplified(trajs, calibrations, ego_states, kpts_all)
    # pixels: [B*T, N, Nc, P, 2]

    # temporal weights (no_grad in torch; pure function here)
    time_diffs = ego_states[..., EGO_TIMESTAMP_IDX] - ego_states[:, -1:, EGO_TIMESTAMP_IDX]
    temporal_w = jnp.exp(-jnp.square(time_diffs) / TEMPORAL_WEIGHT_DECAY * 3.0)  # [B, T]

    # masked per-(b,n,t,cam,p,l) weights (tiny tensor)
    w_npl = fw_flat.reshape(b, n, nc, p, lv)
    w6 = w_npl[:, :, None] * temporal_w[:, None, :, None, None, None]   # [b,n,t,nc,p,l]
    valid = (pixels[..., 0] >= 0.0).reshape(b, t, n, nc, p)             # module: invalid = u < 0
    valid = jnp.transpose(valid, (0, 2, 1, 3, 4))[..., None]            # [b,n,t,nc,p,1]
    w6 = w6 * valid.astype(w6.dtype)

    if use_pallas:
        # layout-only prep of the TINY per-point tensors that feed the fused kernel;
        # the feature maps themselves stay in native NCHW layout (free reshape only).
        pix6 = pixels.reshape(b, t, n, nc, p, 2)
        pix_u = jnp.transpose(pix6[..., 0], (0, 1, 3, 2, 4)).reshape(b, t * nc, 1, n * p)
        pix_v = jnp.transpose(pix6[..., 1], (0, 1, 3, 2, 4)).reshape(b, t * nc, 1, n * p)
        w_k = jnp.transpose(w6, (0, 2, 3, 5, 1, 4)).reshape(b, t * nc * lv, 1, n * p)
        wsum = jnp.maximum(w6.sum(axis=(2, 3, 4, 5)), 1e-6)             # [b, n]
        inv_ws = (1.0 / wsum).reshape(b, n, 1)
        feats = [features_dict[camera_ids[ic]][il].reshape(
                     b * t, c, FPN_SHAPES[il][0] * FPN_SHAPES[il][1])
                 for ic in range(nc) for il in range(lv)]
        new_content_queries = _run_fused_agg_pallas(
            pix_u, pix_v, w_k, content_queries, inv_ws, feats)          # [B, N, 2C]
    else:
        # pure-JAX reference: grid-sample everything, then torch-style weighted mean
        per_cam = []
        for ic in range(nc):
            pix = pixels[:, :, ic, :, :] * 2.0 - 1.0                    # [B*T,N,P,2]
            grid = pix.reshape(b * t, n * p, 2)
            per_level = []
            for il in range(lv):
                feat = features_dict[camera_ids[ic]][il]
                s = _grid_sample_bilinear(feat, grid)                   # [B*T,C,N*P]
                per_level.append(s.reshape(b * t, c, n, p))
            per_cam.append(jnp.stack(per_level, axis=-1))               # [B*T,C,N,P,L]
        features = jnp.stack(per_cam, axis=3)                           # [B*T,C,N,Nc,P,L]
        f7 = features.reshape(b, t, c, n, nc, p, lv)
        w7 = jnp.transpose(w6, (0, 2, 1, 3, 4, 5)).reshape(b, t, 1, n, nc, p, lv)
        wf = (f7 * w7).sum(axis=(1, 4, 5, 6))                           # [B, C, N]
        ws = jnp.maximum(w7.sum(axis=(1, 4, 5, 6)), 1e-6)               # [B, 1, N]
        agg = jnp.transpose(wf / ws, (0, 2, 1))                         # [B, N, C]
        new_content_queries = jnp.concatenate([content_queries, agg], axis=-1)

    return pixels, new_content_queries


# ----------------------------- main --------------------------------------------
if __name__ == "__main__":
    key = jax.random.PRNGKey(0)
    keys = jax.random.split(key, 10)
    params = init_params(keys[0])
    unit_points = generate_bbox_corners_points()

    # trajectories: centers ~8m in front of the cameras
    centers = jnp.stack([
        1.5 * jax.random.normal(keys[1], (B, N_QUERIES)),
        1.5 * jax.random.normal(keys[2], (B, N_QUERIES)),
        8.0 + 1.0 * jax.random.normal(keys[3], (B, N_QUERIES)),
    ], axis=-1).astype(jnp.float32)
    trajs = jnp.zeros((B, N_QUERIES, TRAJ_DIM), jnp.float32).at[..., 0:3].set(centers)

    content_queries = jax.random.normal(keys[4], (B, N_QUERIES, QUERY_DIM), jnp.float32)
    pos_queries = 0.1 * jax.random.normal(keys[5], (B, N_QUERIES, QUERY_DIM), jnp.float32)

    calibrations = jnp.zeros((B, N_CAMS, CAM_DIM), jnp.float32)
    calibrations = calibrations.at[..., 0].set(10.0)   # fx
    calibrations = calibrations.at[..., 1].set(10.0)   # fy
    calibrations = calibrations.at[..., 2].set(8.0)    # cx
    calibrations = calibrations.at[..., 3].set(8.0)    # cy
    calibrations = calibrations.at[..., 4:7].set(
        0.2 * jax.random.normal(keys[6], (B, N_CAMS, 3)))

    ego_states = jnp.zeros((B, SEQ_LEN, EGO_DIM), jnp.float32)
    ts = jnp.linspace(-0.5 * (SEQ_LEN - 1), 0.0, SEQ_LEN).astype(jnp.float32)
    ego_states = ego_states.at[..., EGO_TIMESTAMP_IDX].set(jnp.broadcast_to(ts, (B, SEQ_LEN)))
    ego_states = ego_states.at[..., 1:4].set(0.3 * jax.random.normal(keys[7], (B, SEQ_LEN, 3)))

    camera_ids = [0, 1]
    features_dict = {}
    fk = jax.random.split(keys[8], N_CAMS * FPN_LEVELS)
    for ic in range(N_CAMS):
        lvls = []
        for il in range(FPN_LEVELS):
            h, w = FPN_SHAPES[il]
            lvls.append(jax.random.normal(fk[ic * FPN_LEVELS + il],
                                          (B * SEQ_LEN, QUERY_DIM, h, w), jnp.float32))
        features_dict[ic] = lvls

    pixels, new_q = forward(params, unit_points, trajs, camera_ids, content_queries,
                            features_dict, calibrations, ego_states, pos_queries,
                            use_pallas=True)
    jax.block_until_ready(new_q)

    # pure-JAX reference (same glue, jnp heads / sampling / aggregation)
    _, new_q_ref = forward(params, unit_points, trajs, camera_ids, content_queries,
                           features_dict, calibrations, ego_states, pos_queries,
                           use_pallas=False)

    assert pixels.shape == (B * SEQ_LEN, N_QUERIES, N_CAMS, KPT_NUM, 2)
    assert new_q.shape == (B, N_QUERIES, 2 * QUERY_DIM)
    np.testing.assert_allclose(np.asarray(new_q), np.asarray(new_q_ref),
                               rtol=3e-3, atol=3e-3)
    print("KERNEL_OK")
</pallas_src>

<mosaic_0001>
module attributes {stable_mosaic.version = 11 : i64} {
  func.func @_heads_kernel(%arg0: memref<16x32xf32, #tpu.memory_space<vmem>>, %arg1: memref<32x12xf32, #tpu.memory_space<vmem>>, %arg2: memref<1x12xf32, #tpu.memory_space<vmem>>, %arg3: memref<32x52xf32, #tpu.memory_space<vmem>>, %arg4: memref<1x52xf32, #tpu.memory_space<vmem>>, %arg5: memref<16x12xf32, #tpu.memory_space<vmem>>, %arg6: memref<16x52xf32, #tpu.memory_space<vmem>>) attributes {dimension_semantics = [], scalar_prefetch = 0 : i64, scratch_operands = 0 : i64, tpu.core_type = #tpu.core_type<tc>} {
    %c0 = arith.constant 0 : index
    %c0_0 = arith.constant 0 : index
    %0 = vector.load %arg0[%c0, %c0_0] : memref<16x32xf32, #tpu.memory_space<vmem>>, vector<16x32xf32>
    %c0_1 = arith.constant 0 : index
    %c0_2 = arith.constant 0 : index
    %1 = vector.load %arg1[%c0_1, %c0_2] : memref<32x12xf32, #tpu.memory_space<vmem>>, vector<32x12xf32>
    %cst = arith.constant dense<0.000000e+00> : vector<16x12xf32>
    %2 = tpu.matmul %0, %1, %cst {dimension_numbers = #tpu.dot_dimension_numbers<[1], [0], [0], [1], [0, 0, 1, 1], [], []>} : vector<16x32xf32>, vector<32x12xf32>, vector<16x12xf32> -> vector<16x12xf32>
    %c0_3 = arith.constant 0 : index
    %c0_4 = arith.constant 0 : index
    %3 = vector.load %arg2[%c0_3, %c0_4] : memref<1x12xf32, #tpu.memory_space<vmem>>, vector<1x12xf32>
    %4 = vector.broadcast %3 : vector<1x12xf32> to vector<16x12xf32>
    %5 = arith.addf %2, %4 : vector<16x12xf32>
    %6 = math.tanh %5 : vector<16x12xf32>
    %cst_5 = arith.constant 3.000000e+00 : f32
    %7 = vector.broadcast %cst_5 : f32 to vector<16x12xf32>
    %8 = arith.mulf %6, %7 : vector<16x12xf32>
    %c0_6 = arith.constant 0 : index
    %c0_7 = arith.constant 0 : index
    %9 = vector.load %arg5[%c0_6, %c0_7] : memref<16x12xf32, #tpu.memory_space<vmem>>, vector<16x12xf32>
    tpu.vector_store %arg5[%c0_6, %c0_7], %8 {strides = array<i32>} : memref<16x12xf32, #tpu.memory_space<vmem>>, vector<16x12xf32>,
    %c0_8 = arith.constant 0 : index
    %c0_9 = arith.constant 0 : index
    %10 = vector.load %arg3[%c0_8, %c0_9] : memref<32x52xf32, #tpu.memory_space<vmem>>, vector<32x52xf32>
    %cst_10 = arith.constant dense<0.000000e+00> : vector<16x52xf32>
    %11 = tpu.matmul %0, %10, %cst_10 {dimension_numbers = #tpu.dot_dimension_numbers<[1], [0], [0], [1], [0, 0, 1, 1], [], []>} : vector<16x32xf32>, vector<32x52xf32>, vector<16x52xf32> -> vector<16x52xf32>
    %c0_11 = arith.constant 0 : index
    %c0_12 = arith.constant 0 : index
    %12 = vector.load %arg4[%c0_11, %c0_12] : memref<1x52xf32, #tpu.memory_space<vmem>>, vector<1x52xf32>
    %13 = vector.broadcast %12 : vector<1x52xf32> to vector<16x52xf32>
    %14 = arith.addf %11, %13 : vector<16x52xf32>
    %15 = arith.negf %14 : vector<16x52xf32>
    %16 = math.exp %15 : vector<16x52xf32>
    %cst_13 = arith.constant 1.000000e+00 : f32
    %17 = vector.broadcast %cst_13 : f32 to vector<16x52xf32>
    %18 = arith.addf %17, %16 : vector<16x52xf32>
    %19 = arith.divf %17, %18 : vector<16x52xf32>
    %c0_14 = arith.constant 0 : index
    %c0_15 = arith.constant 0 : index
    %20 = vector.load %arg6[%c0_14, %c0_15] : memref<16x52xf32, #tpu.memory_space<vmem>>, vector<16x52xf32>
    tpu.vector_store %arg6[%c0_14, %c0_15], %19 {strides = array<i32>} : memref<16x52xf32, #tpu.memory_space<vmem>>, vector<16x52xf32>,
    return
  }
}

</mosaic_0001>

<llo_original>
// kernel: tpu_custom_call.1
$region0: #{tpu_custom_call.1}
  #allocation0 [shape = 'u32[]', space=smem, size = 0x4, offset = 0x4, fixed_abs, tag = 'smem constant byte address 0x4 - core index']
  #allocation1 [shape = 'u32[144,128]{1,0:T(1,128)}', space=vmem, size = 0x12000, scoped, tag = 'internal scratch']
  %s0 = inlined_call_operand.vmem [shape: f32[16,32], index: 0, kind: input, shape index: {}]
  %s1 = inlined_call_operand.vmem [shape: f32[32,12], index: 1, kind: input, shape index: {}]
  %s2 = inlined_call_operand.vmem [shape: f32[1,12], index: 2, kind: input, shape index: {}]
  %s3 = inlined_call_operand.vmem [shape: f32[32,52], index: 3, kind: input, shape index: {}]
  %s4 = inlined_call_operand.vmem [shape: f32[1,52], index: 4, kind: input, shape index: {}]
  %s5 = inlined_call_operand.hbm [shape: f32[16,12], index: 5, kind: output, shape index: {0}]
  %s6 = inlined_call_operand.hbm [shape: f32[16,52], index: 6, kind: output, shape index: {1}]
  %7 = xla_tuple %s5, %s6
  %s8 = sld [smem:[#allocation0]]
  $region38: #{tpu_custom_call.1} parent=0
    _
  %s10 = ssub.s32 1, %s8
  %s11 = scalar_select 0, %s10, %s8
  $region1: #{tpu_custom_call.1} parent=0
    #allocation2 [shape = 'u8[8192]{0}', space=vmem, size = 0x2000, scoped, tag = 'output window, operand 0, single buffered']
    #allocation3 [shape = 's32[1]{0}', space=sflag, size = 0x4, scoped, tag = 'scoped memory for tpu_custom_call.1']
    #allocation4 [shape = 'u8[8192]{0}', space=vmem, size = 0x2000, scoped, tag = 'output window, operand 1, single buffered']
    #allocation5 [shape = 's32[1]{0}', space=sflag, size = 0x4, scoped, tag = 'scoped memory for tpu_custom_call.1']
    %12 = vsyncpa [#allocation3], 0
    %13 = vsyncpa [#allocation5], 0
    // Predicated region
    $region2: #{tpu_custom_call.1} parent=1 // pred_check
      _
    $region3: #{tpu_custom_call.1} parent=1 // pred_check_branch
      %15 = sbr.rel (0) target = $region5
    $region4: #{tpu_custom_call.1} parent=1 // pred_region
      _
    $region5: #{tpu_custom_call.1} parent=1 // pred_fallthru
      _
    // Predicated region
    $region6: #{tpu_custom_call.1} parent=1 // pred_check
      _
    $region7: #{tpu_custom_call.1} parent=1 // pred_check_branch
      %17 = sbr.rel (0) target = $region9
    $region8: #{tpu_custom_call.1} parent=1 // pred_region
      _
    $region9: #{tpu_custom_call.1} parent=1 // pred_fallthru
      _
    // Predicated region
    $region10: #{tpu_custom_call.1} parent=1 // pred_check
      _
    $region11: #{tpu_custom_call.1} parent=1 // pred_check_branch
      %19 = sbr.rel (0) target = $region13
    $region12: #{tpu_custom_call.1} parent=1 // pred_region
      _
    $region13: #{tpu_custom_call.1} parent=1 // pred_fallthru
      _
    // Predicated region
    $region14: #{tpu_custom_call.1} parent=1 // pred_check
      _
    $region15: #{tpu_custom_call.1} parent=1 // pred_check_branch
      %21 = sbr.rel (0) target = $region17
    $region16: #{tpu_custom_call.1} parent=1 // pred_region
      _
    $region17: #{tpu_custom_call.1} parent=1 // pred_fallthru
      _
    // Predicated region
    $region18: #{tpu_custom_call.1} parent=1 // pred_check
      _
    $region19: #{tpu_custom_call.1} parent=1 // pred_check_branch
      %23 = sbr.rel (0) target = $region21
    $region20: #{tpu_custom_call.1} parent=1 // pred_region
      _
    $region21: #{tpu_custom_call.1} parent=1 // pred_fallthru
      _
    %v24 = vld [vmem:[%s0] sm:$0xff]
    %v25 = vld [vmem:[%s0 + $0x8] sm:$0xff]
    %v26 = vld [vmem:[%s1] sm:$0xff]
    %v27 = vld [vmem:[%s1 + $0x8] sm:$0xff]
    %v28 = vld [vmem:[%s1 + $0x10] sm:$0xff]
    %v29 = vld [vmem:[%s1 + $0x18] sm:$0xff]
    %v30 = vld [vmem:[%s2] sm:$0x1]
    %v32 = vlaneseq
    %v33 = vshrl.u32 %v32, 7
    %v34 = vsub.s32 0, %v33
    %v35 = vrot.slane %v30, %v34
    %vm37 = vcmask 261120
    %v39 = vsel %vm37, %v24, 0
    %v42 = vsel %vm37, %v25, 0
    %44 = vmatprep.subr.mxu0 0.0
    %45 = vmatpush1.msra.mxu0 %v26
    %46 = vmatprep.subr.mxu0 0.0
    %47 = vmatpush1.msra.mxu0 %v27
    %48 = vmatprep.subr.mxu0 0.0
    %49 = vmatpush1.msra.mxu0 %v28
    %50 = vmatprep.subr.mxu0 0.0
    %51 = vmatpush1.msra.mxu0 %v29
    %52 = vmatprep.subr.mxu0 0.0
    %53 = vmatpush1.msra.mxu0 0.0
    %54 = vmatprep.subr.mxu0 0.0
    %55 = vmatpush1.msra.mxu0 0.0
    %56 = vmatprep.subr.mxu0 0.0
    %57 = vmatpush1.msra.mxu0 0.0
    %58 = vmatprep.subr.mxu0 0.0
    %59 = vmatpush1.msra.mxu0 0.0
    %60 = vmatprep.subr.mxu0 0.0
    %61 = vmatpush1.msra.mxu0 0.0
    %62 = vmatprep.subr.mxu0 0.0
    %63 = vmatpush1.msra.mxu0 0.0
    %64 = vmatprep.subr.mxu0 0.0
    %65 = vmatpush1.msra.mxu0 0.0
    %66 = vmatprep.subr.mxu0 0.0
    %67 = vmatpush1.msra.mxu0 0.0
    %68 = vmatprep.subr.mxu0 0.0
    %69 = vmatpush1.msra.mxu0 0.0
    %70 = vmatprep.subr.mxu0 0.0
    %71 = vmatpush1.msra.mxu0 0.0
    %72 = vmatprep.subr.mxu0 0.0
    %73 = vmatpush1.msra.mxu0 0.0
    %74 = vmatprep.subr.mxu0 0.0
    %75 = vmatpush1.msra.mxu0 0.0
    %76 = vmatprep.subr.mxu0 0.0
    %77 = vmatpush1.msra.mxu0 0.0
    %78 = vmatprep.subr.mxu0 0.0
    %79 = vmatpush1.msra.mxu0 0.0
    %80 = vmatprep.subr.mxu0 0.0
    %81 = vmatpush1.msra.mxu0 0.0
    %82 = vmatprep.subr.mxu0 0.0
    %83 = vmatpush1.msra.mxu0 0.0
    %84 = vmatprep.subr.mxu0 0.0
    %85 = vmatpush1.msra.mxu0 0.0
    %86 = vmatprep.subr.mxu0 0.0
    %87 = vmatpush1.msra.mxu0 0.0
    %88 = vmatprep.subr.mxu0 0.0
    %89 = vmatpush1.msra.mxu0 0.0
    %90 = vmatprep.subr.mxu0 0.0
    %91 = vmatpush1.msra.mxu0 0.0
    %92 = vmatprep.subr.mxu0 0.0
    %93 = vmatpush1.msra.mxu0 0.0
    %94 = vmatprep.subr.mxu0 0.0
    %95 = vmatpush1.msra.mxu0 0.0
    %96 = vmatprep.subr.mxu0 0.0
    %97 = vmatpush1.msra.mxu0 0.0
    %98 = vmatprep.subr.mxu0 0.0
    %99 = vmatpush1.msra.mxu0 0.0
    %100 = vmatprep.subr.mxu0 0.0
    %101 = vmatpush1.msra.mxu0 0.0
    %102 = vmatprep.subr.mxu0 0.0
    %103 = vmatpush1.msra.mxu0 0.0
    %104 = vmatprep.subr.mxu0 0.0
    %105 = vmatpush1.msra.mxu0 0.0
    %106 = vmatprep.subr.mxu0 0.0
    %107 = vmatpush1.msra.mxu0 0.0
    %108 = vmatprep.mubr.f32.mxu0 0.0
    %109 = vmatmul.mubr.f32.gmra.mrb[0].mxu0 %v39
    %v110 = vpop.f32.mrb[0].mxu0
    %v111 = vadd.f32 %v35, %v110
    %v112 = vpop.f32.mrb[0].mxu0
    %113 = vmatprep.mubr.f32.mxu0 0.0
    %114 = vmatmul.mubr.f32.gmra.mrb[0].mxu0 %v42
    %v115 = vpop.f32.mrb[0].mxu0
    %v116 = vadd.f32 %v35, %v115
    %v117 = vpop.f32.mrb[0].mxu0
    %118 = vdwg.mxu0
    %v119 = vtanh.pop %v111
    %v120 = vtanh.pop %v116
    %v121 = vmul.f32 %v119, 3.0
    %v122 = vmul.f32 %v120, 3.0
    %vm123 = vcmask 97280
    %124 = vst.msk [vmem:[#allocation2] sm:$0xff] %vm123, %v121
    %125 = vst.msk [vmem:[#allocation2 + $0x8] sm:$0xff] %vm123, %v122
    %v126 = vld [vmem:[%s3] sm:$0xff]
    %v127 = vld [vmem:[%s3 + $0x8] sm:$0xff]
    %v128 = vld [vmem:[%s3 + $0x10] sm:$0xff]
    %v129 = vld [vmem:[%s3 + $0x18] sm:$0xff]
    %v130 = vld [vmem:[%s4] sm:$0x1]
    %v132 = vlaneseq
    %v133 = vshrl.u32 %v132, 7
    %v134 = vsub.s32 0, %v133
    %v135 = vrot.slane %v130, %v134
    %137 = vmatprep.subr.mxu0 0.0
    %138 = vmatpush1.msra.mxu0 %v126
    %139 = vmatprep.subr.mxu0 0.0
    %140 = vmatpush1.msra.mxu0 %v127
    %141 = vmatprep.subr.mxu0 0.0
    %142 = vmatpush1.msra.mxu0 %v128
    %143 = vmatprep.subr.mxu0 0.0
    %144 = vmatpush1.msra.mxu0 %v129
    %145 = vmatprep.subr.mxu0 0.0
    %146 = vmatpush1.msra.mxu0 0.0
    %147 = vmatprep.subr.mxu0 0.0
    %148 = vmatpush1.msra.mxu0 0.0
    %149 = vmatprep.subr.mxu0 0.0
    %150 = vmatpush1.msra.mxu0 0.0
    %151 = vmatprep.subr.mxu0 0.0
    %152 = vmatpush1.msra.mxu0 0.0
    %153 = vmatprep.subr.mxu0 0.0
    %154 = vmatpush1.msra.mxu0 0.0
    %155 = vmatprep.subr.mxu0 0.0
    %156 = vmatpush1.msra.mxu0 0.0
    %157 = vmatprep.subr.mxu0 0.0
    %158 = vmatpush1.msra.mxu0 0.0
    %159 = vmatprep.subr.mxu0 0.0
    %160 = vmatpush1.msra.mxu0 0.0
    %161 = vmatprep.subr.mxu0 0.0
    %162 = vmatpush1.msra.mxu0 0.0
    %163 = vmatprep.subr.mxu0 0.0
    %164 = vmatpush1.msra.mxu0 0.0
    %165 = vmatprep.subr.mxu0 0.0
    %166 = vmatpush1.msra.mxu0 0.0
    %167 = vmatprep.subr.mxu0 0.0
    %168 = vmatpush1.msra.mxu0 0.0
    %169 = vmatprep.subr.mxu0 0.0
    %170 = vmatpush1.msra.mxu0 0.0
    %171 = vmatprep.subr.mxu0 0.0
    %172 = vmatpush1.msra.mxu0 0.0
    %173 = vmatprep.subr.mxu0 0.0
    %174 = vmatpush1.msra.mxu0 0.0
    %175 = vmatprep.subr.mxu0 0.0
    %176 = vmatpush1.msra.mxu0 0.0
    %177 = vmatprep.subr.mxu0 0.0
    %178 = vmatpush1.msra.mxu0 0.0
    %179 = vmatprep.subr.mxu0 0.0
    %180 = vmatpush1.msra.mxu0 0.0
    %181 = vmatprep.subr.mxu0 0.0
    %182 = vmatpush1.msra.mxu0 0.0
    %183 = vmatprep.subr.mxu0 0.0
    %184 = vmatpush1.msra.mxu0 0.0
    %185 = vmatprep.subr.mxu0 0.0
    %186 = vmatpush1.msra.mxu0 0.0
    %187 = vmatprep.subr.mxu0 0.0
    %188 = vmatpush1.msra.mxu0 0.0
    %189 = vmatprep.subr.mxu0 0.0
    %190 = vmatpush1.msra.mxu0 0.0
    %191 = vmatprep.subr.mxu0 0.0
    %192 = vmatpush1.msra.mxu0 0.0
    %193 = vmatprep.subr.mxu0 0.0
    %194 = vmatpush1.msra.mxu0 0.0
    %195 = vmatprep.subr.mxu0 0.0
    %196 = vmatpush1.msra.mxu0 0.0
    %197 = vmatprep.subr.mxu0 0.0
    %198 = vmatpush1.msra.mxu0 0.0
    %199 = vmatprep.subr.mxu0 0.0
    %200 = vmatpush1.msra.mxu0 0.0
    %201 = vmatprep.mubr.f32.mxu0 0.0
    %202 = vmatmul.mubr.f32.gmra.mrb[0].mxu0 %v39
    %v203 = vpop.f32.mrb[0].mxu0
    %v204 = vadd.f32 %v135, %v203
    %v205 = vpop.f32.mrb[0].mxu0
    %206 = vmatprep.mubr.f32.mxu0 0.0
    %207 = vmatmul.mubr.f32.gmra.mrb[0].mxu0 %v42
    %v208 = vpop.f32.mrb[0].mxu0
    %v209 = vadd.f32 %v135, %v208
    %v210 = vpop.f32.mrb[0].mxu0
    %211 = vdwg.mxu0
    %v212 = vxor.u32 %v204, 2147483648
    %v213 = vxor.u32 %v209, 2147483648
    %v214 = vmul.f32 %v212, 1.442695
    %v215 = vpow.pop %v214
    %v216 = vmul.f32 %v213, 1.442695
    %v217 = vpow.pop %v216
    %v218 = vadd.f32 %v215, 1.0
    %v219 = vadd.f32 %v217, 1.0
    %v220 = vrcp.pop %v218
    %v221 = vmul.f32 1.0, %v220
    %v222 = vrcp.pop %v219
    %v223 = vmul.f32 1.0, %v222
    %vm224 = vcmask 424960
    %225 = vst.msk [vmem:[#allocation4] sm:$0xff] %vm224, %v221
    %226 = vst.msk [vmem:[#allocation4 + $0x8] sm:$0xff] %vm224, %v223
    // Predicated region
    $region22: #{tpu_custom_call.1} parent=1 // pred_check
      _
    $region23: #{tpu_custom_call.1} parent=1 // pred_check_branch
      %228 = sbr.rel (0) target = $region25
    $region24: #{tpu_custom_call.1} parent=1 // pred_region
      %s230 = ssub.s32 256, 256
      %231 = vsyncadd [#allocation3], %s230
      %s232 = sshll.u32 [#allocation2], 4
      %s233 = int_to_ptr.vmem [resolvable:$true] %s232
      %238 = dma.vmem_to_hbm [thread:$0]  %s233, 256, %s5, [#allocation3], 128, 128, 8
    $region25: #{tpu_custom_call.1} parent=1 // pred_fallthru
      _
    // Predicated region
    $region26: #{tpu_custom_call.1} parent=1 // pred_check
      _
    $region27: #{tpu_custom_call.1} parent=1 // pred_check_branch
      %240 = sbr.rel (0) target = $region29
    $region28: #{tpu_custom_call.1} parent=1 // pred_region
      %s242 = ssub.s32 256, 256
      %243 = vsyncadd [#allocation5], %s242
      %s244 = sshll.u32 [#allocation4], 4
      %s245 = int_to_ptr.vmem [resolvable:$true] %s244
      %250 = dma.vmem_to_hbm [thread:$0]  %s245, 256, %s6, [#allocation5], 128, 128, 8
    $region29: #{tpu_custom_call.1} parent=1 // pred_fallthru
      _
    // Predicated region
    $region30: #{tpu_custom_call.1} parent=1 // pred_check
      _
    $region31: #{tpu_custom_call.1} parent=1 // pred_check_branch
      %252 = sbr.rel (0) target = $region33
    $region32: #{tpu_custom_call.1} parent=1 // pred_region
      %253 = dma.done [#allocation3], 256
    $region33: #{tpu_custom_call.1} parent=1 // pred_fallthru
      _
    // Predicated region
    $region34: #{tpu_custom_call.1} parent=1 // pred_check
      _
    $region35: #{tpu_custom_call.1} parent=1 // pred_check_branch
      %255 = sbr.rel (0) target = $region37
    $region36: #{tpu_custom_call.1} parent=1 // pred_region
      %256 = dma.done [#allocation5], 256
    $region37: #{tpu_custom_call.1} parent=1 // pred_fallthru
      _
    %257 = vsyncpa [#allocation3], 1
    %258 = vsyncpa [#allocation5], 1

</llo_original>
